<compile_context>
chip_gen: v6e
topology: v6e:2x2x1
jax: 0.10.0
libtpu: 0.0.40
codegen_flags: <defaults>
</compile_context>

<pallas_src>
import jax
import jax.numpy as jnp
from jax.experimental import pallas as pl
from jax.experimental.pallas import tpu as pltpu


def custom_conv2d(x, weight, bias, threshold, scale, stride=1, padding=0,
                  compute_dtype=jnp.bfloat16):
    """x: (N, C, H, W) f32; weight: (O, C, KH, KW); returns (N, O, OH, OW) in x.dtype (NCHW).

    compute_dtype is an explicit precision mode: bf16 (default, MXU-friendly) or f32.
    Accumulation is always f32.
    """
    N, C, H, W = x.shape
    O, Ci, KH, KW = weight.shape
    assert Ci == C
    OH = (H + 2 * padding - KH) // stride + 1
    OW = (W + 2 * padding - KW) // stride + 1

    Kp = KH * KW * C                              # single contraction depth for the MXU
    o_gran = 128 if O <= 128 else 256             # 256-wide RHS fills the v6e/v7x MXU N dim
    O_pad = -(-O // o_gran) * o_gran
    itemsize = jnp.dtype(compute_dtype).itemsize

    # ---- generation-aware VMEM budget / band size -----------------------------------------
    try:
        vmem_cap = int(pltpu.get_tpu_info().vmem_capacity_bytes)
    except Exception:                             # fallback if query unavailable
        vmem_cap = 64 * 1024 * 1024
    vmem_limit = int(max(32 << 20, min(vmem_cap * 3 // 4, 96 << 20)))  # 48 MiB on v7x, 96 MiB v5e/v6e
    vmem_budget = vmem_limit // 2                 # leave headroom for compiler scratch
    Kp_lane = -(-Kp // 128) * 128                 # lane-padded K footprint in VMEM
    per_pixel = 2 * Kp_lane * itemsize + 2 * O_pad * itemsize   # double-buffered in + out
    w_bytes = Kp_lane * O_pad * itemsize
    pix_budget = max(256, (vmem_budget - w_bytes) // per_pixel)
    pix_target = min(pix_budget, 2048 if vmem_cap >= (100 << 20) else 1024)
    TH = max(1, min(OH, pix_target // max(OW, 1)))            # output rows per band
    nb = -(-OH // TH)
    while N * nb < 2 and TH > 1:                  # >= 2 grid steps: keep both v7x TCs busy
        TH = -(-TH // 2)
        nb = -(-OH // TH)
    OH_pad = nb * TH
    M_tile = TH * OW                              # output pixels per grid step

    # ---- wrapper glue: NHWC, spatial pad, band-local im2col (K-order kh, kw, c) -------------
    xh = jnp.transpose(x, (0, 2, 3, 1))                                   # (N, H, W, C)
    h_needed = (OH_pad - 1) * stride + KH
    pad_bottom = max(0, h_needed - (H + padding))
    xp = jnp.pad(xh, ((0, 0), (padding, pad_bottom), (padding, padding), (0, 0)))
    cols = []
    for kh in range(KH):
        for kw in range(KW):
            cols.append(xp[:, kh:kh + (OH_pad - 1) * stride + 1:stride,
                            kw:kw + (OW - 1) * stride + 1:stride, :])     # (N, OH_pad, OW, C)
    lhs = jnp.concatenate(cols, axis=-1)                                  # (N, OH_pad, OW, Kp)
    lhs = lhs.reshape(N, nb, M_tile, Kp).astype(compute_dtype)            # band-local im2col

    # weight -> (Kp, O_pad) with matching (kh, kw, c) K-order; threshold folded into bias.
    w_r = jnp.transpose(weight, (2, 3, 1, 0)).reshape(Kp, O)
    w_r = jnp.pad(w_r, ((0, 0), (0, O_pad - O))).astype(compute_dtype)
    b_eff = jnp.pad((bias - threshold).reshape(1, O),
                    ((0, 0), (0, O_pad - O))).astype(jnp.float32)
    s = jnp.reshape(scale, (1,)).astype(jnp.float32)

    store_dtype = compute_dtype                   # bf16 writeback halves output HBM traffic

    def kernel(lhs_ref, w_ref, b_ref, s_ref, o_ref):
        # single K = KH*KW*C MXU matmul; f32 result consumed directly by the epilogue
        acc = jnp.dot(lhs_ref[0, 0], w_ref[...], preferred_element_type=jnp.float32)
        # epilogue: scale * relu(conv + bias - threshold)
        y = jnp.maximum(acc + b_ref[...], 0.0) * s_ref[0]
        o_ref[0, 0] = y.astype(o_ref.dtype)

    flops = 2 * N * nb * M_tile * Kp * O_pad
    bytes_accessed = (lhs.size * itemsize + w_r.size * itemsize + b_eff.size * 4
                      + N * nb * M_tile * O_pad * jnp.dtype(store_dtype).itemsize)

    out = pl.pallas_call(
        kernel,
        out_shape=jax.ShapeDtypeStruct((N, nb, M_tile, O_pad), store_dtype),
        grid_spec=pl.GridSpec(
            grid=(N, nb),
            in_specs=[
                pl.BlockSpec((1, 1, M_tile, Kp), lambda n, t: (n, t, 0, 0)),   # band im2col
                pl.BlockSpec((Kp, O_pad), lambda n, t: (0, 0)),                # weights (resident)
                pl.BlockSpec((1, O_pad), lambda n, t: (0, 0)),                 # bias - threshold
                pl.BlockSpec(memory_space=pltpu.MemorySpace.SMEM),             # scale scalar
            ],
            out_specs=pl.BlockSpec((1, 1, M_tile, O_pad), lambda n, t: (n, t, 0, 0)),
        ),
        compiler_params=pltpu.CompilerParams(
            dimension_semantics=("parallel", "parallel"),
            vmem_limit_bytes=vmem_limit),
        cost_estimate=pl.CostEstimate(flops=flops, transcendentals=0,
                                      bytes_accessed=int(bytes_accessed)),
    )(lhs, w_r, b_eff, s)

    y = out.reshape(N, OH_pad, OW, O_pad)[:, :OH, :, :O]   # drop row-band / channel padding
    return jnp.transpose(y, (0, 3, 1, 2)).astype(x.dtype)  # NHWC -> NCHW (module interface)


if __name__ == "__main__":
    key = jax.random.PRNGKey(0)
    k_w, k_x = jax.random.split(key)

    # small shapes consistent with the module
    N, Cin, Cout, H, W, KS = 2, 4, 8, 16, 16, 3
    stride, padding = 1, 1

    # deterministic parameter init mirroring nn.init.kaiming_normal_(mode='fan_out', relu)
    fan_out = Cout * KS * KS
    std = (2.0 / fan_out) ** 0.5
    weight = jax.random.normal(k_w, (Cout, Cin, KS, KS), jnp.float32) * std
    bias = jnp.zeros((Cout,), jnp.float32)
    threshold = jnp.array(0.1, jnp.float32)
    scale = jnp.array(1.0, jnp.float32)

    x = jax.random.normal(k_x, (N, Cin, H, W), jnp.float32)

    y = custom_conv2d(x, weight, bias, threshold, scale, stride, padding)
    y = jax.block_until_ready(y)

    # reference check (pure JAX, f32)
    ref = jax.lax.conv_general_dilated(
        x, weight, (stride, stride), [(padding, padding), (padding, padding)],
        dimension_numbers=("NCHW", "OIHW", "NCHW"))
    ref = ref + bias.reshape(1, Cout, 1, 1)
    ref = scale * jnp.maximum(ref - threshold, 0.0)

    assert y.shape == (N, Cout, H, W)
    # bf16 inputs on the MXU (f32 accumulation) + bf16 writeback -> loosened tolerance vs f32.
    assert jnp.allclose(y, ref, atol=5e-2, rtol=5e-2), "mismatch vs reference"
    print("KERNEL_OK")
</pallas_src>

<mosaic_0001>
module attributes {stable_mosaic.version = 11 : i64} {
  func.func @kernel(%arg0: i32, %arg1: i32, %arg2: memref<1x1x256x36xbf16, #tpu.memory_space<vmem>>, %arg3: memref<36x128xbf16, #tpu.memory_space<vmem>>, %arg4: memref<1x128xf32, #tpu.memory_space<vmem>>, %arg5: memref<1xf32, #tpu.memory_space<smem>>, %arg6: memref<1x1x256x128xbf16, #tpu.memory_space<vmem>>) attributes {dimension_semantics = [#tpu.dimension_semantics<parallel>, #tpu.dimension_semantics<parallel>], iteration_bounds = array<i64: 2, 1>, scalar_prefetch = 0 : i64, scratch_operands = 0 : i64, tpu.core_type = #tpu.core_type<tc>, window_params = [{transform_indices = @transform_0, window_bounds = array<i64: 1, 1, 256, 36>}, {pipeline_mode = #tpu.pipeline_mode<synchronous>, transform_indices = @transform_1, window_bounds = array<i64: 36, 128>}, {pipeline_mode = #tpu.pipeline_mode<synchronous>, transform_indices = @transform_2, window_bounds = array<i64: 1, 128>}, {transform_indices = @transform_3, window_bounds = array<i64: 1>}, {transform_indices = @transform_4, window_bounds = array<i64: 1, 1, 256, 128>}]} {
    %c0 = arith.constant 0 : index
    %c0_0 = arith.constant 0 : index
    %c0_1 = arith.constant 0 : index
    %c0_2 = arith.constant 0 : index
    %0 = vector.load %arg2[%c0, %c0_0, %c0_1, %c0_2] : memref<1x1x256x36xbf16, #tpu.memory_space<vmem>>, vector<1x1x256x36xbf16>
    %1 = vector.shape_cast %0 : vector<1x1x256x36xbf16> to vector<256x36xbf16>
    %c0_3 = arith.constant 0 : index
    %c0_4 = arith.constant 0 : index
    %2 = vector.load %arg3[%c0_3, %c0_4] : memref<36x128xbf16, #tpu.memory_space<vmem>>, vector<36x128xbf16>
    %cst = arith.constant dense<0.000000e+00> : vector<256x128xf32>
    %3 = tpu.matmul %1, %2, %cst {dimension_numbers = #tpu.dot_dimension_numbers<[1], [0], [0], [1], [0, 0, 1, 1], [], []>} : vector<256x36xbf16>, vector<36x128xbf16>, vector<256x128xf32> -> vector<256x128xf32>
    %c0_5 = arith.constant 0 : index
    %c0_6 = arith.constant 0 : index
    %4 = vector.load %arg4[%c0_5, %c0_6] : memref<1x128xf32, #tpu.memory_space<vmem>>, vector<1x128xf32>
    %5 = vector.broadcast %4 : vector<1x128xf32> to vector<256x128xf32>
    %6 = arith.addf %3, %5 : vector<256x128xf32>
    %cst_7 = arith.constant 0.000000e+00 : f32
    %7 = vector.broadcast %cst_7 : f32 to vector<256x128xf32>
    %8 = arith.maximumf %6, %7 : vector<256x128xf32>
    %c0_8 = arith.constant 0 : index
    %9 = memref.load %arg5[%c0_8] : memref<1xf32, #tpu.memory_space<smem>>
    %10 = vector.broadcast %9 : f32 to vector<256x128xf32>
    %11 = arith.mulf %8, %10 : vector<256x128xf32>
    %12 = arith.truncf %11 : vector<256x128xf32> to vector<256x128xbf16>
    %c0_9 = arith.constant 0 : index
    %c0_10 = arith.constant 0 : index
    %c0_11 = arith.constant 0 : index
    %c0_12 = arith.constant 0 : index
    %13 = vector.load %arg6[%c0_9, %c0_10, %c0_11, %c0_12] : memref<1x1x256x128xbf16, #tpu.memory_space<vmem>>, vector<1x1x256x128xbf16>
    %14 = vector.shape_cast %13 : vector<1x1x256x128xbf16> to vector<256x128xbf16>
    %15 = vector.shape_cast %12 : vector<256x128xbf16> to vector<1x1x256x128xbf16>
    tpu.vector_store %arg6[%c0_9, %c0_10, %c0_11, %c0_12], %15 {strides = array<i32>} : memref<1x1x256x128xbf16, #tpu.memory_space<vmem>>, vector<1x1x256x128xbf16>,
    return
  }
  func.func @transform_0(%arg0: i32, %arg1: i32) -> (i32, i32, i32, i32) {
    %c0_i32 = arith.constant 0 : i32
    %c0_i32_0 = arith.constant 0 : i32
    %c0_i32_1 = arith.constant 0 : i32
    return %arg0, %arg1, %c0_i32, %c0_i32_0 : i32, i32, i32, i32
  }
  func.func @transform_1(%arg0: i32, %arg1: i32) -> (i32, i32) {
    %c0_i32 = arith.constant 0 : i32
    %c0_i32_0 = arith.constant 0 : i32
    %c0_i32_1 = arith.constant 0 : i32
    return %c0_i32, %c0_i32_0 : i32, i32
  }
  func.func @transform_2(%arg0: i32, %arg1: i32) -> (i32, i32) {
    %c0_i32 = arith.constant 0 : i32
    %c0_i32_0 = arith.constant 0 : i32
    %c0_i32_1 = arith.constant 0 : i32
    return %c0_i32, %c0_i32_0 : i32, i32
  }
  func.func @transform_3(%arg0: i32, %arg1: i32) -> i32 {
    %c0_i32 = arith.constant 0 : i32
    %c0_i32_0 = arith.constant 0 : i32
    return %c0_i32 : i32
  }
  func.func @transform_4(%arg0: i32, %arg1: i32) -> (i32, i32, i32, i32) {
    %c0_i32 = arith.constant 0 : i32
    %c0_i32_0 = arith.constant 0 : i32
    %c0_i32_1 = arith.constant 0 : i32
    return %arg0, %arg1, %c0_i32, %c0_i32_0 : i32, i32, i32, i32
  }
}

</mosaic_0001>

<llo_original>
// kernel: tpu_custom_call.1
$region0: #{tpu_custom_call.1}
  #allocation0 [shape = 'u32[]', space=smem, size = 0x4, offset = 0x4, fixed_abs, tag = 'smem constant byte address 0x4 - core index']
  #allocation1 [shape = 'u32[144,128]{1,0:T(1,128)}', space=vmem, size = 0x12000, scoped, tag = 'internal scratch']
  #allocation2 [shape = 'f32[1]{0:T(128)S(6)}', space=smem, size = 0x200, scoped, tag = 'scoped memory for tpu_custom_call.1']
  %s0 = inlined_call_operand.vmem [shape: bf16[2,1,256,36], index: 0, kind: input, shape index: {}]
  %s1 = inlined_call_operand.vmem [shape: bf16[36,128], index: 1, kind: input, shape index: {}]
  %s2 = inlined_call_operand.vmem [shape: f32[1,128], index: 2, kind: input, shape index: {}]
  %s3 = inlined_call_operand.<no memory space> [shape: f32[1], index: 3, kind: input, shape index: {}]
  %s4 = inlined_call_operand.hbm [shape: bf16[2,1,256,128], index: 4, kind: output, shape index: {}]
  %s5 = sld [smem:[#allocation0]]
  $region49: #{tpu_custom_call.1} parent=0
    _
  %s7 = ssub.s32 1, %s5
  %s8 = scalar_select 0, %s7, %s5
  %9 = sst [smem:[#allocation2]] %s3
  $region1: #{tpu_custom_call.1} parent=0
    #allocation3 [shape = 'u8[131072]{0}', space=vmem, size = 0x20000, scoped, tag = 'output window, operand 0']
    #allocation4 [shape = 's32[2]{0}', space=sflag, size = 0x8, scoped, tag = 'scoped memory for tpu_custom_call.1']
    %10 = vsyncpa [#allocation4], 0
    %s11 = scalar_lea.sflag [#allocation4], 1
    %12 = vsyncpa %s11, 0
    loop: start=0, step=1, limit=4
    $region2: #{tpu_custom_call.1} parent=1 // loop_pre_header
      _
    $region3: #{tpu_custom_call.1} parent=1 // loop_header
      %s14 = sphi 0, %s18
      %p15 = scmp.ge.s32.totalorder %s14, 4
      %s21 = sphi 0, %s33
      %s22 = sphi 0, %s29
      %s23 = sphi 0, %s21
      %s24 = sphi 0, %s22
      %s25 = sphi 0, %s23
      %s26 = sphi 0, %s24
      %s38 = sphi 0, %s40
      %s41 = sphi 0, %s38
      %s42 = sphi 0, %s41
      %s58 = sphi 0, %s42
      %s62 = sphi 0, %s62
      %s64 = sphi 0, %s62
      %s65 = sphi 0, %s64
      %s79 = sphi 0, %s65
      %s83 = sphi 0, %s83
      %s85 = sphi 0, %s83
      %s86 = sphi 0, %s85
      %s100 = sphi 0, %s86
      %s104 = sphi 0, %s104
      %s106 = sphi 0, %s104
      %s107 = sphi 0, %s106
      %s121 = sphi 0, %s107
      %s129 = sphi 0, %s131
      %s132 = sphi 0, %s129
      %s133 = sphi 0, %s132
      %s149 = sphi 0, %s133
    $region4: #{tpu_custom_call.1} parent=1 // loop_header_branch
      %17 = sbr.rel (%p15) target = $region8
    $region5: #{tpu_custom_call.1} parent=1 // loop_body
      %s19 = ssub.s32 %s14, 1
      %s20 = ssub.s32 %s14, 2
      %s27 = sadd.s32 1, %s22
      %p28 = scmp.ge.s32.totalorder %s27, 1
      %s29 = scalar_select %p28, 0, %s27
      %s30 = sadd.s32 1, %s21
      %s31 = scalar_select %p28, %s30, %s21
      %p32 = scmp.ge.s32.totalorder %s31, 2
      %s33 = scalar_select %p32, 0, %s31
      %s34 = ssub.s32 %s21, %s33
      %s35 = ssub.s32 %s22, %s29
      %s36 = sor.u32 %s34, %s35
      %p37 = scmp.eq.s32.totalorder %s36, 0
      %s39 = sadd.s32 %s38, 1
      %s40 = scalar_select %p37, %s38, %s39
      %p43 = pneg %p37
      %p44 = scmp.eq.s32.totalorder %s14, 1
      %p45 = por %p43, %p44
      %p46 = scmp.ne.s32.totalorder %s38, %s41
      %p47 = scmp.eq.s32.totalorder %s14, 0
      %p48 = por %p46, %p47
      %p49 = scmp.ne.s32.totalorder %s38, %s41
      %p50 = scmp.eq.s32.totalorder %s19, 1
      %p51 = por %p49, %p50
      %p52 = scmp.ne.s32.totalorder %s41, %s42
      %p53 = scmp.eq.s32.totalorder %s19, 0
      %p54 = por %p52, %p53
      %p55 = scmp.ne.s32.totalorder %s41, %s42
      %p56 = scmp.eq.s32.totalorder %s20, 1
      %p57 = por %p55, %p56
      %p59 = scmp.ne.s32.totalorder %s42, %s58
      %p60 = scmp.eq.s32.totalorder %s20, 0
      %p61 = por %p59, %p60
      %s63 = sadd.s32 %s62, 1
      %p66 = scmp.eq.s32.totalorder %s14, 1
      %p67 = scmp.ne.s32.totalorder %s62, %s64
      %p68 = scmp.eq.s32.totalorder %s14, 0
      %p69 = por %p67, %p68
      %p70 = scmp.ne.s32.totalorder %s62, %s64
      %p71 = scmp.eq.s32.totalorder %s19, 1
      %p72 = por %p70, %p71
      %p73 = scmp.ne.s32.totalorder %s64, %s65
      %p74 = scmp.eq.s32.totalorder %s19, 0
      %p75 = por %p73, %p74
      %p76 = scmp.ne.s32.totalorder %s64, %s65
      %p77 = scmp.eq.s32.totalorder %s20, 1
      %p78 = por %p76, %p77
      %p80 = scmp.ne.s32.totalorder %s65, %s79
      %p81 = scmp.eq.s32.totalorder %s20, 0
      %p82 = por %p80, %p81
      %s84 = sadd.s32 %s83, 1
      %p87 = scmp.eq.s32.totalorder %s14, 1
      %p88 = scmp.ne.s32.totalorder %s83, %s85
      %p89 = scmp.eq.s32.totalorder %s14, 0
      %p90 = por %p88, %p89
      %p91 = scmp.ne.s32.totalorder %s83, %s85
      %p92 = scmp.eq.s32.totalorder %s19, 1
      %p93 = por %p91, %p92
      %p94 = scmp.ne.s32.totalorder %s85, %s86
      %p95 = scmp.eq.s32.totalorder %s19, 0
      %p96 = por %p94, %p95
      %p97 = scmp.ne.s32.totalorder %s85, %s86
      %p98 = scmp.eq.s32.totalorder %s20, 1
      %p99 = por %p97, %p98
      %p101 = scmp.ne.s32.totalorder %s86, %s100
      %p102 = scmp.eq.s32.totalorder %s20, 0
      %p103 = por %p101, %p102
      %s105 = sadd.s32 %s104, 1
      %p108 = scmp.eq.s32.totalorder %s14, 1
      %p109 = scmp.ne.s32.totalorder %s104, %s106
      %p110 = scmp.eq.s32.totalorder %s14, 0
      %p111 = por %p109, %p110
      %p112 = scmp.ne.s32.totalorder %s104, %s106
      %p113 = scmp.eq.s32.totalorder %s19, 1
      %p114 = por %p112, %p113
      %p115 = scmp.ne.s32.totalorder %s106, %s107
      %p116 = scmp.eq.s32.totalorder %s19, 0
      %p117 = por %p115, %p116
      %p118 = scmp.ne.s32.totalorder %s106, %s107
      %p119 = scmp.eq.s32.totalorder %s20, 1
      %p120 = por %p118, %p119
      %p122 = scmp.ne.s32.totalorder %s107, %s121
      %p123 = scmp.eq.s32.totalorder %s20, 0
      %p124 = por %p122, %p123
      %s125 = ssub.s32 %s21, %s33
      %s126 = ssub.s32 %s22, %s29
      %s127 = sor.u32 %s125, %s126
      %p128 = scmp.eq.s32.totalorder %s127, 0
      %s130 = sadd.s32 %s129, 1
      %s131 = scalar_select %p128, %s129, %s130
      %p134 = pneg %p128
      %p135 = scmp.eq.s32.totalorder %s14, 1
      %p136 = por %p134, %p135
      %p137 = scmp.ne.s32.totalorder %s129, %s132
      %p138 = scmp.eq.s32.totalorder %s14, 0
      %p139 = por %p137, %p138
      %p140 = scmp.ne.s32.totalorder %s129, %s132
      %p141 = scmp.eq.s32.totalorder %s19, 1
      %p142 = por %p140, %p141
      %p143 = scmp.ne.s32.totalorder %s132, %s133
      %p144 = scmp.eq.s32.totalorder %s19, 0
      %p145 = por %p143, %p144
      %p146 = scmp.ne.s32.totalorder %s132, %s133
      %p147 = scmp.eq.s32.totalorder %s20, 1
      %p148 = por %p146, %p147
      %p150 = scmp.ne.s32.totalorder %s133, %s149
      %p151 = scmp.eq.s32.totalorder %s20, 0
      %p152 = por %p150, %p151
      %p153 = scmp.le.s32.totalorder 1, %s14
      %p154 = scmp.lt.s32.totalorder %s14, 3
      %p155 = pnand %p153, %p154
      %p156 = pneg %p155
      // Predicated region
      $region9: #{tpu_custom_call.1} parent=5 // pred_check
        _
      $region10: #{tpu_custom_call.1} parent=5 // pred_check_branch
        %158 = sbr.rel (%p155) target = $region12
      $region11: #{tpu_custom_call.1} parent=5 // pred_region
        %s159 = ssub.s32 %s14, 1
        // Predicated region
        $region13: #{tpu_custom_call.1} parent=11 // pred_check
          %p160 = pneg %p75
        $region14: #{tpu_custom_call.1} parent=11 // pred_check_branch
          %162 = sbr.rel (%p160) target = $region16
        $region15: #{tpu_custom_call.1} parent=11 // pred_region
          _
        $region16: #{tpu_custom_call.1} parent=11 // pred_fallthru
          _
        // Predicated region
        $region17: #{tpu_custom_call.1} parent=11 // pred_check
          %p163 = pneg %p96
        $region18: #{tpu_custom_call.1} parent=11 // pred_check_branch
          %165 = sbr.rel (%p163) target = $region20
        $region19: #{tpu_custom_call.1} parent=11 // pred_region
          _
        $region20: #{tpu_custom_call.1} parent=11 // pred_fallthru
          _
        // Predicated region
        $region21: #{tpu_custom_call.1} parent=11 // pred_check
          %p166 = pneg %p117
        $region22: #{tpu_custom_call.1} parent=11 // pred_check_branch
          %168 = sbr.rel (%p166) target = $region24
        $region23: #{tpu_custom_call.1} parent=11 // pred_region
          _
        $region24: #{tpu_custom_call.1} parent=11 // pred_fallthru
          _
      $region12: #{tpu_custom_call.1} parent=5 // pred_fallthru
        _
      %p169 = scmp.lt.s32.totalorder %s14, 2
      // Predicated region
      $region25: #{tpu_custom_call.1} parent=5 // pred_check
        %p170 = pneg %p169
      $region26: #{tpu_custom_call.1} parent=5 // pred_check_branch
        %172 = sbr.rel (%p170) target = $region28
      $region27: #{tpu_custom_call.1} parent=5 // pred_region
        // Predicated region
        $region29: #{tpu_custom_call.1} parent=27 // pred_check
          %p173 = pneg %p48
        $region30: #{tpu_custom_call.1} parent=27 // pred_check_branch
          %175 = sbr.rel (%p173) target = $region32
        $region31: #{tpu_custom_call.1} parent=27 // pred_region
          %p176 = scmp.lt.s32.totalorder %s21, 1
          %s177 = scalar_select %p176, %s21, 1
          %p178 = scmp.lt.s32.totalorder %s22, 0
          %s179 = scalar_select %p178, %s22, 0
          %s180 = smul.addr %s179, 32
          %s181 = smul.addr %s177, 32
          %s182 = sadd.s32 %s180, %s181
          %s183 = smul.addr %s182, 4
          %s184 = scalar_lea.vmem %s0, %s183
        $region32: #{tpu_custom_call.1} parent=27 // pred_fallthru
          _
      $region28: #{tpu_custom_call.1} parent=5 // pred_fallthru
        _
      %p185 = scmp.le.s32.totalorder 1, %s14
      %p186 = scmp.lt.s32.totalorder %s14, 3
      %p187 = pnand %p185, %p186
      %p188 = pneg %p187
      // Predicated region
      $region33: #{tpu_custom_call.1} parent=5 // pred_check
        _
      $region34: #{tpu_custom_call.1} parent=5 // pred_check_branch
        %190 = sbr.rel (%p187) target = $region36
      $region35: #{tpu_custom_call.1} parent=5 // pred_region
        %s191 = ssub.s32 %s14, 1
        %p192 = scmp.lt.s32.totalorder %s23, 1
        %s193 = scalar_select %p192, %s23, 1
        %p194 = scmp.lt.s32.totalorder %s24, 0
        %s195 = scalar_select %p194, %s24, 0
        %s196 = smul.addr %s195, 32
        %s197 = smul.addr %s193, 32
        %s198 = sadd.s32 %s196, %s197
        %s199 = smul.addr %s198, 4
        %s200 = scalar_lea.vmem %s0, %s199
        %p201 = pneg %p54
        %p202 = pneg %p51
        %p203 = pneg %p75
        %p204 = pneg %p72
        %p205 = pneg %p96
        %p206 = pneg %p93
        %p207 = pneg %p117
        %p208 = pneg %p114
        %p209 = pneg %p145
        %p210 = pneg %p142
        %s211 = sand.u32 %s132, 1
        %s212 = scalar_lea.sflag [#allocation4], %s211
        %s213 = sand.u32 %s132, 1
        %s214 = smul.addr %s213, 128
        %s215 = scalar_lea.vmem [#allocation3], %s214
        %p216 = scmp.lt.s32.totalorder %s23, 1
        %s217 = scalar_select %p216, %s23, 1
        %p218 = scmp.lt.s32.totalorder %s24, 0
        %s219 = scalar_select %p218, %s24, 0
        %s220 = smul.addr %s219, 32
        %s221 = smul.addr %s217, 32
        %s222 = sadd.s32 %s220, %s221
        %s223 = smul.addr %s222, 4
        %s224 = scalar_lea.vmem %s0, %s223
        %v226 = vld [vmem:[%s224] sm:$0xf]
        %v227 = vld [vmem:[%s224 + $0x4] sm:$0xf]
        %v228 = vld [vmem:[%s224 + $0x8] sm:$0xf]
        %v229 = vld [vmem:[%s224 + $0xc] sm:$0xf]
        %v230 = vld [vmem:[%s224 + $0x10] sm:$0xf]
        %v231 = vld [vmem:[%s224 + $0x14] sm:$0xf]
        %v232 = vld [vmem:[%s224 + $0x18] sm:$0xf]
        %v233 = vld [vmem:[%s224 + $0x1c] sm:$0xf]
        %v234 = vld [vmem:[%s224 + $0x20] sm:$0xf]
        %v235 = vld [vmem:[%s224 + $0x24] sm:$0xf]
        %v236 = vld [vmem:[%s224 + $0x28] sm:$0xf]
        %v237 = vld [vmem:[%s224 + $0x2c] sm:$0xf]
        %v238 = vld [vmem:[%s224 + $0x30] sm:$0xf]
        %v239 = vld [vmem:[%s224 + $0x34] sm:$0xf]
        %v240 = vld [vmem:[%s224 + $0x38] sm:$0xf]
        %v241 = vld [vmem:[%s224 + $0x3c] sm:$0xf]
        %v242 = vld [vmem:[%s224 + $0x40] sm:$0xf]
        %v243 = vld [vmem:[%s224 + $0x44] sm:$0xf]
        %v244 = vld [vmem:[%s224 + $0x48] sm:$0xf]
        %v245 = vld [vmem:[%s224 + $0x4c] sm:$0xf]
        %v246 = vld [vmem:[%s224 + $0x50] sm:$0xf]
        %v247 = vld [vmem:[%s224 + $0x54] sm:$0xf]
        %v248 = vld [vmem:[%s224 + $0x58] sm:$0xf]
        %v249 = vld [vmem:[%s224 + $0x5c] sm:$0xf]
        %v250 = vld [vmem:[%s224 + $0x60] sm:$0xf]
        %v251 = vld [vmem:[%s224 + $0x64] sm:$0xf]
        %v252 = vld [vmem:[%s224 + $0x68] sm:$0xf]
        %v253 = vld [vmem:[%s224 + $0x6c] sm:$0xf]
        %v254 = vld [vmem:[%s224 + $0x70] sm:$0xf]
        %v255 = vld [vmem:[%s224 + $0x74] sm:$0xf]
        %v256 = vld [vmem:[%s224 + $0x78] sm:$0xf]
        %v257 = vld [vmem:[%s224 + $0x7c] sm:$0xf]
        %v258 = vld [vmem:[%s1] sm:$0xf]
        %v259 = vld [vmem:[%s1 + $0x4] sm:$0xf]
        %v260 = vld [vmem:[%s1 + $0x8] sm:$0xf]
        %v261 = vld [vmem:[%s1 + $0xc] sm:$0xf]
        %v262 = vld [vmem:[%s1 + $0x10] sm:$0x3]
        %v263 = vld [vmem:[%s2] sm:$0x1]
        %v265 = vlaneseq
        %v266 = vshrl.u32 %v265, 7
        %v267 = vsub.s32 0, %v266
        %v268 = vrot.slane %v263, %v267
        %v302 = vunpack.c.l.b16 %v226
        %v303 = vunpack.c.l.b16 %v227
        %v304 = vunpack.c.l.b16 %v228
        %v305 = vunpack.c.l.b16 %v229
        %v306 = vunpack.c.l.b16 %v230
        %v307 = vunpack.c.l.b16 %v231
        %v308 = vunpack.c.l.b16 %v232
        %v309 = vunpack.c.l.b16 %v233
        %v310 = vunpack.c.l.b16 %v234
        %v311 = vunpack.c.l.b16 %v235
        %v312 = vunpack.c.l.b16 %v236
        %v313 = vunpack.c.l.b16 %v237
        %v314 = vunpack.c.l.b16 %v238
        %v315 = vunpack.c.l.b16 %v239
        %v316 = vunpack.c.l.b16 %v240
        %v317 = vunpack.c.l.b16 %v241
        %v318 = vunpack.c.l.b16 %v242
        %v319 = vunpack.c.l.b16 %v243
        %v320 = vunpack.c.l.b16 %v244
        %v321 = vunpack.c.l.b16 %v245
        %v322 = vunpack.c.l.b16 %v246
        %v323 = vunpack.c.l.b16 %v247
        %v324 = vunpack.c.l.b16 %v248
        %v325 = vunpack.c.l.b16 %v249
        %v326 = vunpack.c.l.b16 %v250
        %v327 = vunpack.c.l.b16 %v251
        %v328 = vunpack.c.l.b16 %v252
        %v329 = vunpack.c.l.b16 %v253
        %v330 = vunpack.c.l.b16 %v254
        %v331 = vunpack.c.l.b16 %v255
        %v332 = vunpack.c.l.b16 %v256
        %v333 = vunpack.c.l.b16 %v257
        %v334 = vpack.c.b16 %v303, %v302
        %v335 = vpack.c.b16 %v305, %v304
        %v336 = vpack.c.b16 %v307, %v306
        %v337 = vpack.c.b16 %v309, %v308
        %v338 = vpack.c.b16 %v311, %v310
        %v339 = vpack.c.b16 %v313, %v312
        %v340 = vpack.c.b16 %v315, %v314
        %v341 = vpack.c.b16 %v317, %v316
        %v342 = vpack.c.b16 %v319, %v318
        %v343 = vpack.c.b16 %v321, %v320
        %v344 = vpack.c.b16 %v323, %v322
        %v345 = vpack.c.b16 %v325, %v324
        %v346 = vpack.c.b16 %v327, %v326
        %v347 = vpack.c.b16 %v329, %v328
        %v348 = vpack.c.b16 %v331, %v330
        %v349 = vpack.c.b16 %v333, %v332
        %v355 = vunpack.c.l.b16 %v258
        %v356 = vunpack.c.l.b16 %v259
        %v357 = vunpack.c.l.b16 %v260
        %v358 = vunpack.c.l.b16 %v261
        %v359 = vunpack.c.l.b16 %v262
        %v360 = vpack.c.b16 %v356, %v355
        %v361 = vpack.c.b16 %v358, %v357
        %v362 = vpack.c.b16 %v359, %v359
        %vm365 = vcmask 293888
        %v367 = vsel %vm365, %v334, 0
        %v370 = vsel %vm365, %v335, 0
        %v373 = vsel %vm365, %v336, 0
        %v376 = vsel %vm365, %v337, 0
        %v379 = vsel %vm365, %v338, 0
        %v382 = vsel %vm365, %v339, 0
        %v385 = vsel %vm365, %v340, 0
        %v388 = vsel %vm365, %v341, 0
        %v391 = vsel %vm365, %v342, 0
        %v394 = vsel %vm365, %v343, 0
        %v397 = vsel %vm365, %v344, 0
        %v400 = vsel %vm365, %v345, 0
        %v403 = vsel %vm365, %v346, 0
        %v406 = vsel %vm365, %v347, 0
        %v409 = vsel %vm365, %v348, 0
        %v412 = vsel %vm365, %v349, 0
        %vm414 = vcmask 1041408
        %v416 = vsel %vm414, %v362, 0
        %418 = vmatprep.subr.bf16.mxu0 0
        %419 = vmatpush1.bf16.msra.mxu0 0
        %420 = vmatprep.subr.bf16.mxu0 0
        %421 = vmatpush1.bf16.msra.mxu0 0
        %422 = vmatprep.subr.bf16.mxu0 0
        %423 = vmatpush1.bf16.msra.mxu0 0
        %424 = vmatprep.subr.bf16.mxu0 0
        %425 = vmatpush1.bf16.msra.mxu0 0
        %426 = vmatprep.subr.bf16.mxu0 0
        %427 = vmatpush1.bf16.msra.mxu0 0
        %428 = vmatprep.subr.bf16.mxu0 0
        %429 = vmatpush1.bf16.msra.mxu0 %v416
        %430 = vmatprep.subr.bf16.mxu0 0
        %431 = vmatpush1.bf16.msra.mxu0 %v361
        %432 = vmatprep.subr.bf16.mxu0 0
        %433 = vmatpush1.bf16.msra.mxu0 %v360
        %434 = vmatprep.subr.bf16.mxu0 0
        %435 = vmatpush2.bf16.msra.mxu0 0
        %436 = vmatprep.subr.bf16.mxu0 0
        %437 = vmatpush2.bf16.msra.mxu0 0
        %438 = vmatprep.subr.bf16.mxu0 0
        %439 = vmatpush2.bf16.msra.mxu0 0
        %440 = vmatprep.subr.bf16.mxu0 0
        %441 = vmatpush2.bf16.msra.mxu0 0
        %442 = vmatprep.subr.bf16.mxu0 0
        %443 = vmatpush2.bf16.msra.mxu0 0
        %444 = vmatprep.subr.bf16.mxu0 0
        %445 = vmatpush2.bf16.msra.mxu0 0
        %446 = vmatprep.subr.bf16.mxu0 0
        %447 = vmatpush2.bf16.msra.mxu0 0
        %448 = vmatprep.subr.bf16.mxu0 0
        %449 = vmatpush2.bf16.msra.mxu0 0
        %450 = vmatprep.mubr.bf16.mxu0 0
        %451 = vmatmul.mubr.bf16.gmra.mxu0 %v367
        %v452 = vpop.f32.mrf.mxu0
        %v453 = vadd.f32 %v268, %v452
        %v454 = vpop.f32.mrf.mxu0
        %v455 = vpop.f32.mrf.mxu0
        %v456 = vadd.f32 %v268, %v455
        %v457 = vpop.f32.mrf.mxu0
        %458 = vmatprep.mubr.bf16.mxu0 0
        %459 = vmatmul.mubr.bf16.gmra.mxu0 %v370
        %v460 = vpop.f32.mrf.mxu0
        %v461 = vadd.f32 %v268, %v460
        %v462 = vpop.f32.mrf.mxu0
        %v463 = vpop.f32.mrf.mxu0
        %v464 = vadd.f32 %v268, %v463
        %v465 = vpop.f32.mrf.mxu0
        %466 = vmatprep.mubr.bf16.mxu0 0
        %467 = vmatmul.mubr.bf16.gmra.mxu0 %v373
        %v468 = vpop.f32.mrf.mxu0
        %v469 = vadd.f32 %v268, %v468
        %v470 = vpop.f32.mrf.mxu0
        %v471 = vpop.f32.mrf.mxu0
        %v472 = vadd.f32 %v268, %v471
        %v473 = vpop.f32.mrf.mxu0
        %474 = vmatprep.mubr.bf16.mxu0 0
        %475 = vmatmul.mubr.bf16.gmra.mxu0 %v376
        %v476 = vpop.f32.mrf.mxu0
        %v477 = vadd.f32 %v268, %v476
        %v478 = vpop.f32.mrf.mxu0
        %v479 = vpop.f32.mrf.mxu0
        %v480 = vadd.f32 %v268, %v479
        %v481 = vpop.f32.mrf.mxu0
        %482 = vmatprep.mubr.bf16.mxu0 0
        %483 = vmatmul.mubr.bf16.gmra.mxu0 %v379
        %v484 = vpop.f32.mrf.mxu0
        %v485 = vadd.f32 %v268, %v484
        %v486 = vpop.f32.mrf.mxu0
        %v487 = vpop.f32.mrf.mxu0
        %v488 = vadd.f32 %v268, %v487
        %v489 = vpop.f32.mrf.mxu0
        %490 = vmatprep.mubr.bf16.mxu0 0
        %491 = vmatmul.mubr.bf16.gmra.mxu0 %v382
        %v492 = vpop.f32.mrf.mxu0
        %v493 = vadd.f32 %v268, %v492
        %v494 = vpop.f32.mrf.mxu0
        %v495 = vpop.f32.mrf.mxu0
        %v496 = vadd.f32 %v268, %v495
        %v497 = vpop.f32.mrf.mxu0
        %498 = vmatprep.mubr.bf16.mxu0 0
        %499 = vmatmul.mubr.bf16.gmra.mxu0 %v385
        %v500 = vpop.f32.mrf.mxu0
        %v501 = vadd.f32 %v268, %v500
        %v502 = vpop.f32.mrf.mxu0
        %v503 = vpop.f32.mrf.mxu0
        %v504 = vadd.f32 %v268, %v503
        %v505 = vpop.f32.mrf.mxu0
        %506 = vmatprep.mubr.bf16.mxu0 0
        %507 = vmatmul.mubr.bf16.gmra.mxu0 %v388
        %v508 = vpop.f32.mrf.mxu0
        %v509 = vadd.f32 %v268, %v508
        %v510 = vpop.f32.mrf.mxu0
        %v511 = vpop.f32.mrf.mxu0
        %v512 = vadd.f32 %v268, %v511
        %v513 = vpop.f32.mrf.mxu0
        %514 = vmatprep.mubr.bf16.mxu0 0
        %515 = vmatmul.mubr.bf16.gmra.mxu0 %v391
        %v516 = vpop.f32.mrf.mxu0
        %v517 = vadd.f32 %v268, %v516
        %v518 = vpop.f32.mrf.mxu0
        %v519 = vpop.f32.mrf.mxu0
        %v520 = vadd.f32 %v268, %v519
        %v521 = vpop.f32.mrf.mxu0
        %522 = vmatprep.mubr.bf16.mxu0 0
        %523 = vmatmul.mubr.bf16.gmra.mxu0 %v394
        %v524 = vpop.f32.mrf.mxu0
        %v525 = vadd.f32 %v268, %v524
        %v526 = vpop.f32.mrf.mxu0
        %v527 = vpop.f32.mrf.mxu0
        %v528 = vadd.f32 %v268, %v527
        %v529 = vpop.f32.mrf.mxu0
        %530 = vmatprep.mubr.bf16.mxu0 0
        %531 = vmatmul.mubr.bf16.gmra.mxu0 %v397
        %v532 = vpop.f32.mrf.mxu0
        %v533 = vadd.f32 %v268, %v532
        %v534 = vpop.f32.mrf.mxu0
        %v535 = vpop.f32.mrf.mxu0
        %v536 = vadd.f32 %v268, %v535
        %v537 = vpop.f32.mrf.mxu0
        %538 = vmatprep.mubr.bf16.mxu0 0
        %539 = vmatmul.mubr.bf16.gmra.mxu0 %v400
        %v540 = vpop.f32.mrf.mxu0
        %v541 = vadd.f32 %v268, %v540
        %v542 = vpop.f32.mrf.mxu0
        %v543 = vpop.f32.mrf.mxu0
        %v544 = vadd.f32 %v268, %v543
        %v545 = vpop.f32.mrf.mxu0
        %546 = vmatprep.mubr.bf16.mxu0 0
        %547 = vmatmul.mubr.bf16.gmra.mxu0 %v403
        %v548 = vpop.f32.mrf.mxu0
        %v549 = vadd.f32 %v268, %v548
        %v550 = vpop.f32.mrf.mxu0
        %v551 = vpop.f32.mrf.mxu0
        %v552 = vadd.f32 %v268, %v551
        %v553 = vpop.f32.mrf.mxu0
        %554 = vmatprep.mubr.bf16.mxu0 0
        %555 = vmatmul.mubr.bf16.gmra.mxu0 %v406
        %v556 = vpop.f32.mrf.mxu0
        %v557 = vadd.f32 %v268, %v556
        %v558 = vpop.f32.mrf.mxu0
        %v559 = vpop.f32.mrf.mxu0
        %v560 = vadd.f32 %v268, %v559
        %v561 = vpop.f32.mrf.mxu0
        %562 = vmatprep.mubr.bf16.mxu0 0
        %563 = vmatmul.mubr.bf16.gmra.mxu0 %v409
        %v564 = vpop.f32.mrf.mxu0
        %v565 = vadd.f32 %v268, %v564
        %v566 = vpop.f32.mrf.mxu0
        %v567 = vpop.f32.mrf.mxu0
        %v568 = vadd.f32 %v268, %v567
        %v569 = vpop.f32.mrf.mxu0
        %570 = vmatprep.mubr.bf16.mxu0 0
        %571 = vmatmul.mubr.bf16.gmra.mxu0 %v412
        %v572 = vpop.f32.mrf.mxu0
        %v573 = vadd.f32 %v268, %v572
        %v574 = vpop.f32.mrf.mxu0
        %v575 = vpop.f32.mrf.mxu0
        %v576 = vadd.f32 %v268, %v575
        %v577 = vpop.f32.mrf.mxu0
        %578 = vdwg.mxu0
        %v579 = vmax.f32 %v453, 0.0
        %v580 = vmax.f32 %v456, 0.0
        %v581 = vmax.f32 %v461, 0.0
        %v582 = vmax.f32 %v464, 0.0
        %v583 = vmax.f32 %v469, 0.0
        %v584 = vmax.f32 %v472, 0.0
        %v585 = vmax.f32 %v477, 0.0
        %v586 = vmax.f32 %v480, 0.0
        %v587 = vmax.f32 %v485, 0.0
        %v588 = vmax.f32 %v488, 0.0
        %v589 = vmax.f32 %v493, 0.0
        %v590 = vmax.f32 %v496, 0.0
        %v591 = vmax.f32 %v501, 0.0
        %v592 = vmax.f32 %v504, 0.0
        %v593 = vmax.f32 %v509, 0.0
        %v594 = vmax.f32 %v512, 0.0
        %v595 = vmax.f32 %v517, 0.0
        %v596 = vmax.f32 %v520, 0.0
        %v597 = vmax.f32 %v525, 0.0
        %v598 = vmax.f32 %v528, 0.0
        %v599 = vmax.f32 %v533, 0.0
        %v600 = vmax.f32 %v536, 0.0
        %v601 = vmax.f32 %v541, 0.0
        %v602 = vmax.f32 %v544, 0.0
        %v603 = vmax.f32 %v549, 0.0
        %v604 = vmax.f32 %v552, 0.0
        %v605 = vmax.f32 %v557, 0.0
        %v606 = vmax.f32 %v560, 0.0
        %v607 = vmax.f32 %v565, 0.0
        %v608 = vmax.f32 %v568, 0.0
        %v609 = vmax.f32 %v573, 0.0
        %v610 = vmax.f32 %v576, 0.0
        %s611 = sld [smem:[#allocation2]]
        %v612 = vstv %s611
        %v613 = vmul.f32 %v579, %v612
        %v614 = vmul.f32 %v580, %v612
        %v615 = vmul.f32 %v581, %v612
        %v616 = vmul.f32 %v582, %v612
        %v617 = vmul.f32 %v583, %v612
        %v618 = vmul.f32 %v584, %v612
        %v619 = vmul.f32 %v585, %v612
        %v620 = vmul.f32 %v586, %v612
        %v621 = vmul.f32 %v587, %v612
        %v622 = vmul.f32 %v588, %v612
        %v623 = vmul.f32 %v589, %v612
        %v624 = vmul.f32 %v590, %v612
        %v625 = vmul.f32 %v591, %v612
        %v626 = vmul.f32 %v592, %v612
        %v627 = vmul.f32 %v593, %v612
        %v628 = vmul.f32 %v594, %v612
        %v629 = vmul.f32 %v595, %v612
        %v630 = vmul.f32 %v596, %v612
        %v631 = vmul.f32 %v597, %v612
        %v632 = vmul.f32 %v598, %v612
        %v633 = vmul.f32 %v599, %v612
        %v634 = vmul.f32 %v600, %v612
        %v635 = vmul.f32 %v601, %v612
        %v636 = vmul.f32 %v602, %v612
        %v637 = vmul.f32 %v603, %v612
        %v638 = vmul.f32 %v604, %v612
        %v639 = vmul.f32 %v605, %v612
        %v640 = vmul.f32 %v606, %v612
        %v641 = vmul.f32 %v607, %v612
        %v642 = vmul.f32 %v608, %v612
        %v643 = vmul.f32 %v609, %v612
        %v644 = vmul.f32 %v610, %v612
        %v645 = vpack.c.bf16 %v614, %v613
        %v646 = vpack.c.bf16 %v616, %v615
        %v647 = vpack.c.bf16 %v618, %v617
        %v648 = vpack.c.bf16 %v620, %v619
        %v649 = vpack.c.bf16 %v622, %v621
        %v650 = vpack.c.bf16 %v624, %v623
        %v651 = vpack.c.bf16 %v626, %v625
        %v652 = vpack.c.bf16 %v628, %v627
        %v653 = vpack.c.bf16 %v630, %v629
        %v654 = vpack.c.bf16 %v632, %v631
        %v655 = vpack.c.bf16 %v634, %v633
        %v656 = vpack.c.bf16 %v636, %v635
        %v657 = vpack.c.bf16 %v638, %v637
        %v658 = vpack.c.bf16 %v640, %v639
        %v659 = vpack.c.bf16 %v642, %v641
        %v660 = vpack.c.bf16 %v644, %v643
        %v677 = vunpack.c.l.b16 %v645
        %v678 = vunpack.c.h.b16 %v645
        %v679 = vunpack.c.l.b16 %v646
        %v680 = vunpack.c.h.b16 %v646
        %v681 = vunpack.c.l.b16 %v647
        %v682 = vunpack.c.h.b16 %v647
        %v683 = vunpack.c.l.b16 %v648
        %v684 = vunpack.c.h.b16 %v648
        %v685 = vunpack.c.l.b16 %v649
        %v686 = vunpack.c.h.b16 %v649
        %v687 = vunpack.c.l.b16 %v650
        %v688 = vunpack.c.h.b16 %v650
        %v689 = vunpack.c.l.b16 %v651
        %v690 = vunpack.c.h.b16 %v651
        %v691 = vunpack.c.l.b16 %v652
        %v692 = vunpack.c.h.b16 %v652
        %v693 = vunpack.c.l.b16 %v653
        %v694 = vunpack.c.h.b16 %v653
        %v695 = vunpack.c.l.b16 %v654
        %v696 = vunpack.c.h.b16 %v654
        %v697 = vunpack.c.l.b16 %v655
        %v698 = vunpack.c.h.b16 %v655
        %v699 = vunpack.c.l.b16 %v656
        %v700 = vunpack.c.h.b16 %v656
        %v701 = vunpack.c.l.b16 %v657
        %v702 = vunpack.c.h.b16 %v657
        %v703 = vunpack.c.l.b16 %v658
        %v704 = vunpack.c.h.b16 %v658
        %v705 = vunpack.c.l.b16 %v659
        %v706 = vunpack.c.h.b16 %v659
        %v707 = vunpack.c.l.b16 %v660
        %v708 = vunpack.c.h.b16 %v660
        %v709 = vpack.c.b16 %v677, %v677
        %v710 = vpack.c.b16 %v678, %v678
        %v711 = vpack.c.b16 %v679, %v679
        %v712 = vpack.c.b16 %v680, %v680
        %v713 = vpack.c.b16 %v681, %v681
        %v714 = vpack.c.b16 %v682, %v682
        %v715 = vpack.c.b16 %v683, %v683
        %v716 = vpack.c.b16 %v684, %v684
        %v717 = vpack.c.b16 %v685, %v685
        %v718 = vpack.c.b16 %v686, %v686
        %v719 = vpack.c.b16 %v687, %v687
        %v720 = vpack.c.b16 %v688, %v688
        %v721 = vpack.c.b16 %v689, %v689
        %v722 = vpack.c.b16 %v690, %v690
        %v723 = vpack.c.b16 %v691, %v691
        %v724 = vpack.c.b16 %v692, %v692
        %v725 = vpack.c.b16 %v693, %v693
        %v726 = vpack.c.b16 %v694, %v694
        %v727 = vpack.c.b16 %v695, %v695
        %v728 = vpack.c.b16 %v696, %v696
        %v729 = vpack.c.b16 %v697, %v697
        %v730 = vpack.c.b16 %v698, %v698
        %v731 = vpack.c.b16 %v699, %v699
        %v732 = vpack.c.b16 %v700, %v700
        %v733 = vpack.c.b16 %v701, %v701
        %v734 = vpack.c.b16 %v702, %v702
        %v735 = vpack.c.b16 %v703, %v703
        %v736 = vpack.c.b16 %v704, %v704
        %v737 = vpack.c.b16 %v705, %v705
        %v738 = vpack.c.b16 %v706, %v706
        %v739 = vpack.c.b16 %v707, %v707
        %v740 = vpack.c.b16 %v708, %v708
        %773 = vst [vmem:[%s215] sm:$0xf] %v709
        %774 = vst [vmem:[%s215 + $0x4] sm:$0xf] %v710
        %775 = vst [vmem:[%s215 + $0x8] sm:$0xf] %v711
        %776 = vst [vmem:[%s215 + $0xc] sm:$0xf] %v712
        %777 = vst [vmem:[%s215 + $0x10] sm:$0xf] %v713
        %778 = vst [vmem:[%s215 + $0x14] sm:$0xf] %v714
        %779 = vst [vmem:[%s215 + $0x18] sm:$0xf] %v715
        %780 = vst [vmem:[%s215 + $0x1c] sm:$0xf] %v716
        %781 = vst [vmem:[%s215 + $0x20] sm:$0xf] %v717
        %782 = vst [vmem:[%s215 + $0x24] sm:$0xf] %v718
        %783 = vst [vmem:[%s215 + $0x28] sm:$0xf] %v719
        %784 = vst [vmem:[%s215 + $0x2c] sm:$0xf] %v720
        %785 = vst [vmem:[%s215 + $0x30] sm:$0xf] %v721
        %786 = vst [vmem:[%s215 + $0x34] sm:$0xf] %v722
        %787 = vst [vmem:[%s215 + $0x38] sm:$0xf] %v723
        %788 = vst [vmem:[%s215 + $0x3c] sm:$0xf] %v724
        %789 = vst [vmem:[%s215 + $0x40] sm:$0xf] %v725
        %790 = vst [vmem:[%s215 + $0x44] sm:$0xf] %v726
        %791 = vst [vmem:[%s215 + $0x48] sm:$0xf] %v727
        %792 = vst [vmem:[%s215 + $0x4c] sm:$0xf] %v728
        %793 = vst [vmem:[%s215 + $0x50] sm:$0xf] %v729
        %794 = vst [vmem:[%s215 + $0x54] sm:$0xf] %v730
        %795 = vst [vmem:[%s215 + $0x58] sm:$0xf] %v731
        %796 = vst [vmem:[%s215 + $0x5c] sm:$0xf] %v732
        %797 = vst [vmem:[%s215 + $0x60] sm:$0xf] %v733
        %798 = vst [vmem:[%s215 + $0x64] sm:$0xf] %v734
        %799 = vst [vmem:[%s215 + $0x68] sm:$0xf] %v735
        %800 = vst [vmem:[%s215 + $0x6c] sm:$0xf] %v736
        %801 = vst [vmem:[%s215 + $0x70] sm:$0xf] %v737
        %802 = vst [vmem:[%s215 + $0x74] sm:$0xf] %v738
        %803 = vst [vmem:[%s215 + $0x78] sm:$0xf] %v739
        %804 = vst [vmem:[%s215 + $0x7c] sm:$0xf] %v740
        %s805 = sand.u32 %s132, 1
        %s806 = scalar_lea.sflag [#allocation4], %s805
        %s807 = sand.u32 %s132, 1
        %s808 = smul.addr %s807, 128
        %s809 = scalar_lea.vmem [#allocation3], %s808
        // Predicated region
        $region37: #{tpu_custom_call.1} parent=35 // pred_check
          %p810 = pneg %p142
        $region38: #{tpu_custom_call.1} parent=35 // pred_check_branch
          %812 = sbr.rel (%p810) target = $region40
        $region39: #{tpu_custom_call.1} parent=35 // pred_region
          %s814 = ssub.s32 2048, 2048
          %815 = vsyncadd %s806, %s814
          %s816 = smul.addr %s24, 32
          %s817 = smul.addr %s23, 32
          %s818 = sadd.s32 %s816, %s817
          %s819 = smul.addr %s818, 64
          %s820 = scalar_lea.hbm %s4, %s819
          %s821 = sshll.u32 %s809, 4
          %s822 = int_to_ptr.vmem [resolvable:$true] %s821
          %827 = dma.vmem_to_hbm [thread:$0]  %s822, 2048, %s820, %s806, 64, 64, 4
        $region40: #{tpu_custom_call.1} parent=35 // pred_fallthru
          _
      $region36: #{tpu_custom_call.1} parent=5 // pred_fallthru
        _
      %p828 = scmp.le.s32.totalorder 2, %s14
      // Predicated region
      $region41: #{tpu_custom_call.1} parent=5 // pred_check
        %p829 = pneg %p828
      $region42: #{tpu_custom_call.1} parent=5 // pred_check_branch
        %831 = sbr.rel (%p829) target = $region44
      $region43: #{tpu_custom_call.1} parent=5 // pred_region
        %s832 = ssub.s32 %s14, 2
        // Predicated region
        $region45: #{tpu_custom_call.1} parent=43 // pred_check
          %p833 = pneg %p148
        $region46: #{tpu_custom_call.1} parent=43 // pred_check_branch
          %835 = sbr.rel (%p833) target = $region48
        $region47: #{tpu_custom_call.1} parent=43 // pred_region
          %s836 = sand.u32 %s133, 1
          %s837 = scalar_lea.sflag [#allocation4], %s836
          %s838 = sand.u32 %s133, 1
          %s839 = smul.addr %s838, 128
          %s840 = scalar_lea.vmem [#allocation3], %s839
          %841 = dma.done %s837, 2048
        $region48: #{tpu_custom_call.1} parent=43 // pred_fallthru
          _
      $region44: #{tpu_custom_call.1} parent=5 // pred_fallthru
        _
    $region6: #{tpu_custom_call.1} parent=1 // loop_footer
      %s18 = sadd.s32 1, %s14
    $region7: #{tpu_custom_call.1} parent=1 // loop_footer_branch
      %13 = sbr.rel target = $region3
    $region8: #{tpu_custom_call.1} parent=1 // loop_exit
      _
    %842 = vsyncpa [#allocation4], 1
    %s843 = scalar_lea.sflag [#allocation4], 1
    %844 = vsyncpa %s843, 1

</llo_original>
